<compile_context>
chip_gen: v6e
topology: v6e:2x2x1
jax: 0.10.0
libtpu: 0.0.40
codegen_flags: <defaults>
</compile_context>

<pallas_src>
import functools

import jax
import jax.numpy as jnp
from jax.experimental import pallas as pl
from jax.experimental.pallas import tpu as pltpu


def _cdiv(a, b):
    return -(-a // b)


def _round_up(x, m):
    return _cdiv(x, m) * m


def _round_down(x, m):
    return (x // m) * m


def _masked_l1_kernel(mask_ref, mel_ref, post_ref, tgt_ref,
                      mel_sum_ref, post_sum_ref, *,
                      tiles_per_chunk, tile_rows, n_rows, has_tail):
    """One (tile_rows, D) slab: masked |diff| reduced over rows via an MXU dot.

    Block shapes:
      mask_ref                   : (1, tile_rows)  VMEM f32 (1.0 = valid frame)
      mel_ref / post_ref / tgt_ref : (tile_rows, D) VMEM, native dtype
      mel_sum_ref / post_sum_ref : (1, 1, D) VMEM f32 per-chunk accumulators
    The outputs use a chunk-only index_map, so they stay resident across the
    inner ("arbitrary") row-tile axis and act as accumulators (init at t == 0).
    """
    @pl.when(pl.program_id(1) == 0)
    def _():
        mel_sum_ref[...] = jnp.zeros_like(mel_sum_ref)
        post_sum_ref[...] = jnp.zeros_like(post_sum_ref)

    tgt = tgt_ref[...].astype(jnp.float32)
    d_mel = jnp.abs(mel_ref[...].astype(jnp.float32) - tgt)
    d_post = jnp.abs(post_ref[...].astype(jnp.float32) - tgt)

    if has_tail:
        # Last global tile is ragged: its out-of-bounds VMEM rows hold garbage.
        # Zero them so 0 * garbage in the dot below cannot produce NaN.
        tile_idx = pl.program_id(0) * tiles_per_chunk + pl.program_id(1)
        rows_valid = n_rows - tile_idx * tile_rows
        row_ids = jax.lax.broadcasted_iota(jnp.int32, d_mel.shape, 0)
        keep = row_ids < rows_valid
        d_mel = jnp.where(keep, d_mel, 0.0)
        d_post = jnp.where(keep, d_post, 0.0)

    # Mask-apply + row reduction as a single (1,R) x (R,D) MXU matmul.
    # precision=HIGHEST keeps f32 accuracy of the |diff| operand.
    # TODO(synk): like the previous version this is multiplicative masking, so
    # NaN/Inf garbage inside *padded-but-in-bounds* frames would propagate,
    # unlike torch.masked_select which excludes those elements entirely.
    m = mask_ref[...]
    mel_sum_ref[...] += jnp.dot(m, d_mel,
                                precision=jax.lax.Precision.HIGHEST,
                                preferred_element_type=jnp.float32)[None]
    post_sum_ref[...] += jnp.dot(m, d_post,
                                 precision=jax.lax.Precision.HIGHEST,
                                 preferred_element_type=jnp.float32)[None]


def fastspeech2_loss(mel_predictions, postnet_mel_predictions, mel_targets,
                     mel_masks, *, max_tile_rows=None,
                     input_vmem_budget_bytes=20 * 1024 * 1024):
    """JAX/Pallas equivalent of FastSpeech2Loss.forward.

    mel_masks: (B, T) bool, True = padding (inverted internally, as in the
    module).  Returns (mel_loss, postnet_mel_loss) as float32 scalars.
    """
    B, T = mel_masks.shape
    D = mel_predictions.shape[-1]

    # The PyTorch module truncates everything to the mask length.  Only slice
    # when actually needed so the usual T_tgt == T case stays copy-free.
    if mel_predictions.shape[1] != T:
        mel_predictions = mel_predictions[:, :T, :]
    if postnet_mel_predictions.shape[1] != T:
        postnet_mel_predictions = postnet_mel_predictions[:, :T, :]
    if mel_targets.shape[1] != T:
        mel_targets = mel_targets[:, :T, :]

    valid = jnp.logical_not(mel_masks)                  # True == valid frame
    n_valid = jnp.sum(valid.astype(jnp.float32))        # scalar, cheap XLA work

    # Lane-dense 2-D layouts: rows = frames, lanes = mel bins; mask is a single
    # lane-dense row.  No dtype cast, no padding of the big arrays.
    n_rows = B * T
    mel2 = mel_predictions.reshape(n_rows, D)
    post2 = postnet_mel_predictions.reshape(n_rows, D)
    tgt2 = mel_targets.reshape(n_rows, D)
    mask_row = valid.astype(jnp.float32).reshape(1, n_rows)

    itemsizes = [jnp.dtype(a.dtype).itemsize for a in (mel2, post2, tgt2)]
    gran = max({4: 8, 2: 16, 1: 32}[s] for s in itemsizes)   # sublane tiling
    d_pad = _round_up(D, 128)                                # VMEM lane padding

    # Tile sizing: biggest row tile whose 3 double-buffered input blocks fit the
    # VMEM budget (v5e-safe once vmem_limit_bytes is raised, v7x-safe at 32 MiB).
    budget_rows = max(input_vmem_budget_bytes // (2 * d_pad * sum(itemsizes)), 128)
    if max_tile_rows is not None:
        budget_rows = min(budget_rows, max_tile_rows)
    full_rows = _round_up(n_rows, gran)
    if full_rows <= budget_rows:
        tile_rows = full_rows
        n_tiles = 1
    else:
        tile_rows = max(_round_down(budget_rows, 128), 128)  # 128 | tile_rows
        n_tiles = _cdiv(n_rows, tile_rows)

    # 2-way megacore split only when it is free (even tile count, enough work);
    # on single-TC chips (v5e/v6e) the grid is sequential anyway.
    n_chunks = 2 if (n_tiles >= 4 and n_tiles % 2 == 0) else 1
    tiles_per_chunk = n_tiles // n_chunks
    padded_rows = n_tiles * tile_rows
    has_tail = padded_rows != n_rows

    if has_tail:
        # Only the tiny mask row is padded (zeros = invalid); the big arrays'
        # ragged tail is handled inside the kernel.
        mask_row = jnp.pad(mask_row, ((0, 0), (0, padded_rows - n_rows)))

    kernel = functools.partial(
        _masked_l1_kernel,
        tiles_per_chunk=tiles_per_chunk, tile_rows=tile_rows,
        n_rows=n_rows, has_tail=has_tail)

    def data_map(c, t):
        return (c * tiles_per_chunk + t, 0)

    def mask_map(c, t):
        return (0, c * tiles_per_chunk + t)

    bytes_in = sum(int(a.size) * s for a, s in zip((mel2, post2, tgt2), itemsizes))
    cost = pl.CostEstimate(
        flops=int(10 * n_rows * D),
        transcendentals=0,
        bytes_accessed=int(bytes_in + 4 * padded_rows + 8 * n_chunks * D))

    mel_sum, post_sum = pl.pallas_call(
        kernel,
        out_shape=(
            jax.ShapeDtypeStruct((n_chunks, 1, D), jnp.float32),
            jax.ShapeDtypeStruct((n_chunks, 1, D), jnp.float32),
        ),
        grid_spec=pltpu.PrefetchScalarGridSpec(
            num_scalar_prefetch=0,
            grid=(n_chunks, tiles_per_chunk),
            in_specs=[
                pl.BlockSpec((1, tile_rows), mask_map),
                pl.BlockSpec((tile_rows, D), data_map),
                pl.BlockSpec((tile_rows, D), data_map),
                pl.BlockSpec((tile_rows, D), data_map),
            ],
            out_specs=[
                pl.BlockSpec((1, 1, D), lambda c, t: (c, 0, 0)),
                pl.BlockSpec((1, 1, D), lambda c, t: (c, 0, 0)),
            ],
        ),
        compiler_params=pltpu.CompilerParams(
            # TODO(synk): on v7x verify the leading "parallel" axis shards
            # across both TensorCores; if not, switch to pltpu.CORE_PARALLEL
            # or pl.core_map.
            dimension_semantics=("parallel", "arbitrary"),
            vmem_limit_bytes=32 * 1024 * 1024),
        cost_estimate=cost,
    )(mask_row, mel2, post2, tgt2)

    # Tiny final reduction / normalization (XLA glue).  NOTE: if every frame is
    # padded this divides by zero (NaN) exactly like the PyTorch reference.
    n_elems = n_valid * jnp.float32(D)
    mel_loss = jnp.sum(mel_sum) / n_elems
    postnet_mel_loss = jnp.sum(post_sum) / n_elems
    return mel_loss, postnet_mel_loss


def _reference_loss(mel_pred, post_pred, mel_tgt, mel_masks):
    """Pure-JAX reference mirroring the PyTorch module (f32 math)."""
    T = mel_masks.shape[1]
    valid = jnp.logical_not(mel_masks).astype(jnp.float32)[:, :, None]
    mel_pred = mel_pred[:, :T].astype(jnp.float32)
    post_pred = post_pred[:, :T].astype(jnp.float32)
    mel_tgt = mel_tgt[:, :T].astype(jnp.float32)
    n = jnp.sum(valid) * mel_pred.shape[-1]
    l1 = jnp.sum(jnp.abs(mel_pred - mel_tgt) * valid) / n
    l2 = jnp.sum(jnp.abs(post_pred - mel_tgt) * valid) / n
    return l1, l2


if __name__ == "__main__":
    key = jax.random.PRNGKey(0)

    # --- Test 1: small f32 case (single tile, T_tgt > T exercises truncation) ---
    B, T, T_tgt, D = 2, 16, 20, 32
    k1, k2, k3 = jax.random.split(key, 3)
    mel_pred = jax.random.normal(k1, (B, T, D), dtype=jnp.float32)
    post_pred = jax.random.normal(k2, (B, T, D), dtype=jnp.float32)
    mel_tgt = jax.random.normal(k3, (B, T_tgt, D), dtype=jnp.float32)
    lengths = jnp.array([16, 11], dtype=jnp.int32)
    mel_masks = jnp.arange(T)[None, :] >= lengths[:, None]     # True = padded

    mel_loss, post_loss = fastspeech2_loss(mel_pred, post_pred, mel_tgt, mel_masks)
    jax.block_until_ready((mel_loss, post_loss))
    ref_mel, ref_post = _reference_loss(mel_pred, post_pred, mel_tgt, mel_masks)
    assert jnp.allclose(mel_loss, ref_mel, rtol=1e-5, atol=1e-5)
    assert jnp.allclose(post_loss, ref_post, rtol=1e-5, atol=1e-5)

    # --- Test 2: bf16, forced small tiles -> multi-tile, 2-chunk, ragged tail ---
    B, T, D = 4, 350, 80
    k1, k2, k3 = jax.random.split(jax.random.PRNGKey(1), 3)
    mel_pred = jax.random.normal(k1, (B, T, D), dtype=jnp.float32).astype(jnp.bfloat16)
    post_pred = jax.random.normal(k2, (B, T, D), dtype=jnp.float32).astype(jnp.bfloat16)
    mel_tgt = jax.random.normal(k3, (B, T, D), dtype=jnp.float32).astype(jnp.bfloat16)
    lengths = jnp.array([350, 123, 7, 300], dtype=jnp.int32)
    mel_masks = jnp.arange(T)[None, :] >= lengths[:, None]

    mel_loss, post_loss = fastspeech2_loss(mel_pred, post_pred, mel_tgt, mel_masks,
                                           max_tile_rows=256)
    jax.block_until_ready((mel_loss, post_loss))
    ref_mel, ref_post = _reference_loss(mel_pred, post_pred, mel_tgt, mel_masks)
    assert jnp.allclose(mel_loss, ref_mel, rtol=1e-4, atol=1e-5)
    assert jnp.allclose(post_loss, ref_post, rtol=1e-4, atol=1e-5)

    # --- Test 3: f32, odd tile count (single chunk), multi-tile, ragged tail ---
    B, T, D = 3, 173, 40
    k1, k2, k3 = jax.random.split(jax.random.PRNGKey(2), 3)
    mel_pred = jax.random.normal(k1, (B, T, D), dtype=jnp.float32)
    post_pred = jax.random.normal(k2, (B, T, D), dtype=jnp.float32)
    mel_tgt = jax.random.normal(k3, (B, T, D), dtype=jnp.float32)
    lengths = jnp.array([173, 64, 9], dtype=jnp.int32)
    mel_masks = jnp.arange(T)[None, :] >= lengths[:, None]

    mel_loss, post_loss = fastspeech2_loss(mel_pred, post_pred, mel_tgt, mel_masks,
                                           max_tile_rows=128)
    jax.block_until_ready((mel_loss, post_loss))
    ref_mel, ref_post = _reference_loss(mel_pred, post_pred, mel_tgt, mel_masks)
    assert jnp.allclose(mel_loss, ref_mel, rtol=1e-5, atol=1e-5)
    assert jnp.allclose(post_loss, ref_post, rtol=1e-5, atol=1e-5)

    print("KERNEL_OK")
</pallas_src>

<mosaic_0001>
module attributes {stable_mosaic.version = 11 : i64} {
  func.func @_masked_l1_kernel(%arg0: i32, %arg1: i32, %arg2: memref<1x32xf32, #tpu.memory_space<vmem>>, %arg3: memref<32x32xf32, #tpu.memory_space<vmem>>, %arg4: memref<32x32xf32, #tpu.memory_space<vmem>>, %arg5: memref<32x32xf32, #tpu.memory_space<vmem>>, %arg6: memref<1x1x32xf32, #tpu.memory_space<vmem>>, %arg7: memref<1x1x32xf32, #tpu.memory_space<vmem>>) attributes {dimension_semantics = [#tpu.dimension_semantics<parallel>, #tpu.dimension_semantics<arbitrary>], iteration_bounds = array<i64: 1, 1>, scalar_prefetch = 0 : i64, scratch_operands = 0 : i64, tpu.core_type = #tpu.core_type<tc>, window_params = [{transform_indices = @transform_0, window_bounds = array<i64: 1, 32>}, {transform_indices = @transform_1, window_bounds = array<i64: 32, 32>}, {transform_indices = @transform_2, window_bounds = array<i64: 32, 32>}, {transform_indices = @transform_3, window_bounds = array<i64: 32, 32>}, {transform_indices = @transform_4, window_bounds = array<i64: 1, 1, 32>}, {transform_indices = @transform_5, window_bounds = array<i64: 1, 1, 32>}]} {
    %c0_i32 = arith.constant 0 : i32
    %0 = arith.cmpi eq, %arg1, %c0_i32 : i32
    %1 = arith.extui %0 : i1 to i32
    %c0_i32_0 = arith.constant 0 : i32
    %2 = arith.cmpi ne, %1, %c0_i32_0 : i32
    scf.if %2 {
      %cst_21 = arith.constant 0.000000e+00 : f32
      %21 = vector.broadcast %cst_21 : f32 to vector<1x1x32xf32>
      %c0_22 = arith.constant 0 : index
      %c0_23 = arith.constant 0 : index
      %c0_24 = arith.constant 0 : index
      %22 = vector.load %arg6[%c0_22, %c0_23, %c0_24] : memref<1x1x32xf32, #tpu.memory_space<vmem>>, vector<1x1x32xf32>
      tpu.vector_store %arg6[%c0_22, %c0_23, %c0_24], %21 {strides = array<i32>} : memref<1x1x32xf32, #tpu.memory_space<vmem>>, vector<1x1x32xf32>,
      %cst_25 = arith.constant 0.000000e+00 : f32
      %23 = vector.broadcast %cst_25 : f32 to vector<1x1x32xf32>
      %c0_26 = arith.constant 0 : index
      %c0_27 = arith.constant 0 : index
      %c0_28 = arith.constant 0 : index
      %24 = vector.load %arg7[%c0_26, %c0_27, %c0_28] : memref<1x1x32xf32, #tpu.memory_space<vmem>>, vector<1x1x32xf32>
      tpu.vector_store %arg7[%c0_26, %c0_27, %c0_28], %23 {strides = array<i32>} : memref<1x1x32xf32, #tpu.memory_space<vmem>>, vector<1x1x32xf32>,
    } else {
    }
    %c0 = arith.constant 0 : index
    %c0_1 = arith.constant 0 : index
    %3 = vector.load %arg5[%c0, %c0_1] : memref<32x32xf32, #tpu.memory_space<vmem>>, vector<32x32xf32>
    %c0_2 = arith.constant 0 : index
    %c0_3 = arith.constant 0 : index
    %4 = vector.load %arg3[%c0_2, %c0_3] : memref<32x32xf32, #tpu.memory_space<vmem>>, vector<32x32xf32>
    %5 = arith.subf %4, %3 : vector<32x32xf32>
    %6 = math.absf %5 : vector<32x32xf32>
    %c0_4 = arith.constant 0 : index
    %c0_5 = arith.constant 0 : index
    %7 = vector.load %arg4[%c0_4, %c0_5] : memref<32x32xf32, #tpu.memory_space<vmem>>, vector<32x32xf32>
    %8 = arith.subf %7, %3 : vector<32x32xf32>
    %9 = math.absf %8 : vector<32x32xf32>
    %c0_6 = arith.constant 0 : index
    %c0_7 = arith.constant 0 : index
    %10 = vector.load %arg2[%c0_6, %c0_7] : memref<1x32xf32, #tpu.memory_space<vmem>>, vector<1x32xf32>
    %c0_8 = arith.constant 0 : index
    %c0_9 = arith.constant 0 : index
    %c0_10 = arith.constant 0 : index
    %11 = vector.load %arg6[%c0_8, %c0_9, %c0_10] : memref<1x1x32xf32, #tpu.memory_space<vmem>>, vector<1x1x32xf32>
    %cst = arith.constant dense<0.000000e+00> : vector<1x32xf32>
    %12 = tpu.matmul %10, %6, %cst {dimension_numbers = #tpu.dot_dimension_numbers<[1], [0], [0], [1], [0, 0, 1, 1], [], []>, precision = #tpu.contract_precision<fp32>} : vector<1x32xf32>, vector<32x32xf32>, vector<1x32xf32> -> vector<1x32xf32>
    %13 = vector.shape_cast %12 : vector<1x32xf32> to vector<1x1x32xf32>
    %14 = arith.addf %11, %13 : vector<1x1x32xf32>
    %c0_11 = arith.constant 0 : index
    %c0_12 = arith.constant 0 : index
    %c0_13 = arith.constant 0 : index
    %15 = vector.load %arg6[%c0_11, %c0_12, %c0_13] : memref<1x1x32xf32, #tpu.memory_space<vmem>>, vector<1x1x32xf32>
    tpu.vector_store %arg6[%c0_11, %c0_12, %c0_13], %14 {strides = array<i32>} : memref<1x1x32xf32, #tpu.memory_space<vmem>>, vector<1x1x32xf32>,
    %c0_14 = arith.constant 0 : index
    %c0_15 = arith.constant 0 : index
    %c0_16 = arith.constant 0 : index
    %16 = vector.load %arg7[%c0_14, %c0_15, %c0_16] : memref<1x1x32xf32, #tpu.memory_space<vmem>>, vector<1x1x32xf32>
    %cst_17 = arith.constant dense<0.000000e+00> : vector<1x32xf32>
    %17 = tpu.matmul %10, %9, %cst_17 {dimension_numbers = #tpu.dot_dimension_numbers<[1], [0], [0], [1], [0, 0, 1, 1], [], []>, precision = #tpu.contract_precision<fp32>} : vector<1x32xf32>, vector<32x32xf32>, vector<1x32xf32> -> vector<1x32xf32>
    %18 = vector.shape_cast %17 : vector<1x32xf32> to vector<1x1x32xf32>
    %19 = arith.addf %16, %18 : vector<1x1x32xf32>
    %c0_18 = arith.constant 0 : index
    %c0_19 = arith.constant 0 : index
    %c0_20 = arith.constant 0 : index
    %20 = vector.load %arg7[%c0_18, %c0_19, %c0_20] : memref<1x1x32xf32, #tpu.memory_space<vmem>>, vector<1x1x32xf32>
    tpu.vector_store %arg7[%c0_18, %c0_19, %c0_20], %19 {strides = array<i32>} : memref<1x1x32xf32, #tpu.memory_space<vmem>>, vector<1x1x32xf32>,
    return
  }
  func.func @transform_0(%arg0: i32, %arg1: i32) -> (i32, i32) {
    %c1_i32 = arith.constant 1 : i32
    %0 = arith.muli %arg0, %c1_i32 : i32
    %1 = arith.addi %0, %arg1 : i32
    %c0_i32 = arith.constant 0 : i32
    %c0_i32_0 = arith.constant 0 : i32
    return %c0_i32, %1 : i32, i32
  }
  func.func @transform_1(%arg0: i32, %arg1: i32) -> (i32, i32) {
    %c1_i32 = arith.constant 1 : i32
    %0 = arith.muli %arg0, %c1_i32 : i32
    %1 = arith.addi %0, %arg1 : i32
    %c0_i32 = arith.constant 0 : i32
    %c0_i32_0 = arith.constant 0 : i32
    return %1, %c0_i32 : i32, i32
  }
  func.func @transform_2(%arg0: i32, %arg1: i32) -> (i32, i32) {
    %c1_i32 = arith.constant 1 : i32
    %0 = arith.muli %arg0, %c1_i32 : i32
    %1 = arith.addi %0, %arg1 : i32
    %c0_i32 = arith.constant 0 : i32
    %c0_i32_0 = arith.constant 0 : i32
    return %1, %c0_i32 : i32, i32
  }
  func.func @transform_3(%arg0: i32, %arg1: i32) -> (i32, i32) {
    %c1_i32 = arith.constant 1 : i32
    %0 = arith.muli %arg0, %c1_i32 : i32
    %1 = arith.addi %0, %arg1 : i32
    %c0_i32 = arith.constant 0 : i32
    %c0_i32_0 = arith.constant 0 : i32
    return %1, %c0_i32 : i32, i32
  }
  func.func @transform_4(%arg0: i32, %arg1: i32) -> (i32, i32, i32) {
    %c0_i32 = arith.constant 0 : i32
    %c0_i32_0 = arith.constant 0 : i32
    %c0_i32_1 = arith.constant 0 : i32
    return %arg0, %c0_i32, %c0_i32_0 : i32, i32, i32
  }
  func.func @transform_5(%arg0: i32, %arg1: i32) -> (i32, i32, i32) {
    %c0_i32 = arith.constant 0 : i32
    %c0_i32_0 = arith.constant 0 : i32
    %c0_i32_1 = arith.constant 0 : i32
    return %arg0, %c0_i32, %c0_i32_0 : i32, i32, i32
  }
}

</mosaic_0001>

<llo_original>
// kernel: tpu_custom_call.1
$region0: #{tpu_custom_call.1}
  #allocation0 [shape = 'u32[]', space=smem, size = 0x4, offset = 0x4, fixed_abs, tag = 'smem constant byte address 0x4 - core index']
  #allocation1 [shape = 'u32[144,128]{1,0:T(1,128)}', space=vmem, size = 0x12000, scoped, tag = 'internal scratch']
  %s0 = inlined_call_operand.hbm [shape: f32[1,32], index: 0, kind: input, shape index: {}]
  %s1 = inlined_call_operand.hbm [shape: f32[32,32], index: 1, kind: input, shape index: {}]
  %s2 = inlined_call_operand.hbm [shape: f32[32,32], index: 2, kind: input, shape index: {}]
  %s3 = inlined_call_operand.hbm [shape: f32[32,32], index: 3, kind: input, shape index: {}]
  %s4 = inlined_call_operand.hbm [shape: f32[1,1,32], index: 4, kind: output, shape index: {0}]
  %s5 = inlined_call_operand.hbm [shape: f32[1,1,32], index: 5, kind: output, shape index: {1}]
  %6 = xla_tuple %s4, %s5
  %s7 = sld [smem:[#allocation0]]
  $region54: #{tpu_custom_call.1} parent=0
    _
  %s9 = ssub.s32 1, %s7
  %s10 = scalar_select 0, %s9, %s7
  $region1: #{tpu_custom_call.1} parent=0
    #allocation2 [shape = 'u8[512]{0}', space=vmem, size = 0x400, scoped, tag = 'input window, operand 0, single buffered']
    #allocation3 [shape = 's32[1]{0}', space=sflag, size = 0x4, scoped, tag = 'scoped memory for tpu_custom_call.1']
    #allocation4 [shape = 's32[1]{0}', space=sflag, size = 0x4, scoped, tag = 'scoped memory for tpu_custom_call.1']
    #allocation5 [shape = 'u8[16384]{0}', space=vmem, size = 0x4000, scoped, tag = 'input window, operand 1, single buffered']
    #allocation6 [shape = 's32[1]{0}', space=sflag, size = 0x4, scoped, tag = 'scoped memory for tpu_custom_call.1']
    #allocation7 [shape = 'u8[16384]{0}', space=vmem, size = 0x4000, scoped, tag = 'input window, operand 2, single buffered']
    #allocation8 [shape = 'u8[16384]{0}', space=vmem, size = 0x4000, scoped, tag = 'input window, operand 3, single buffered']
    #allocation9 [shape = 's32[1]{0}', space=sflag, size = 0x4, scoped, tag = 'scoped memory for tpu_custom_call.1']
    #allocation10 [shape = 'u8[512]{0}', space=vmem, size = 0x400, scoped, tag = 'output window, operand 0, single buffered']
    #allocation11 [shape = 'u8[512]{0}', space=vmem, size = 0x400, scoped, tag = 'output window, operand 1, single buffered']
    #allocation12 [shape = 's32[1]{0}', space=sflag, size = 0x4, scoped, tag = 'scoped memory for tpu_custom_call.1']
    %11 = vsyncpa [#allocation3], 0
    %12 = vsyncpa [#allocation6], 0
    %13 = vsyncpa [#allocation9], 0
    %14 = vsyncpa [#allocation4], 0
    %15 = vsyncpa [#allocation12], 0
    // Predicated region
    $region2: #{tpu_custom_call.1} parent=1 // pred_check
      _
    $region3: #{tpu_custom_call.1} parent=1 // pred_check_branch
      %17 = sbr.rel (0) target = $region5
    $region4: #{tpu_custom_call.1} parent=1 // pred_region
      %s18 = sadd.s32 0, 0
      %s20 = ssub.s32 16, 16
      %21 = vsyncadd [#allocation3], %s20
      %s22 = smul.addr %s18, 16
      %s23 = scalar_lea.hbm %s0, %s22
      %s25 = sshll.u32 [#allocation2], 4
      %s26 = int_to_ptr.vmem [resolvable:$true] %s25
      %28 = dma.hbm_to_vmem [thread:$0]  %s23, 16, %s26, [#allocation3]
    $region5: #{tpu_custom_call.1} parent=1 // pred_fallthru
      _
    // Predicated region
    $region6: #{tpu_custom_call.1} parent=1 // pred_check
      _
    $region7: #{tpu_custom_call.1} parent=1 // pred_check_branch
      %30 = sbr.rel (0) target = $region9
    $region8: #{tpu_custom_call.1} parent=1 // pred_region
      %s31 = sadd.s32 0, 0
      %s32 = smul.u32 4, %s31
      %s34 = ssub.s32 512, 512
      %35 = vsyncadd [#allocation6], %s34
      %s36 = smul.addr %s32, 128
      %s37 = scalar_lea.hbm %s1, %s36
      %s38 = sshll.u32 [#allocation5], 4
      %s39 = int_to_ptr.vmem [resolvable:$true] %s38
      %44 = dma.hbm_to_vmem [thread:$0]  %s37, 512, %s39, [#allocation6], 128, 128, 8
    $region9: #{tpu_custom_call.1} parent=1 // pred_fallthru
      _
    // Predicated region
    $region10: #{tpu_custom_call.1} parent=1 // pred_check
      _
    $region11: #{tpu_custom_call.1} parent=1 // pred_check_branch
      %46 = sbr.rel (0) target = $region13
    $region12: #{tpu_custom_call.1} parent=1 // pred_region
      %s47 = sadd.s32 0, 0
      %s48 = smul.u32 4, %s47
      %s50 = ssub.s32 512, 512
      %51 = vsyncadd [#allocation6], %s50
      %s52 = smul.addr %s48, 128
      %s53 = scalar_lea.hbm %s2, %s52
      %s54 = sshll.u32 [#allocation7], 4
      %s55 = int_to_ptr.vmem [resolvable:$true] %s54
      %60 = dma.hbm_to_vmem [thread:$0]  %s53, 512, %s55, [#allocation6], 128, 128, 8
    $region13: #{tpu_custom_call.1} parent=1 // pred_fallthru
      _
    // Predicated region
    $region14: #{tpu_custom_call.1} parent=1 // pred_check
      _
    $region15: #{tpu_custom_call.1} parent=1 // pred_check_branch
      %62 = sbr.rel (0) target = $region17
    $region16: #{tpu_custom_call.1} parent=1 // pred_region
      %s63 = sadd.s32 0, 0
      %s64 = smul.u32 4, %s63
      %s66 = ssub.s32 512, 512
      %67 = vsyncadd [#allocation9], %s66
      %s68 = smul.addr %s64, 128
      %s69 = scalar_lea.hbm %s3, %s68
      %s70 = sshll.u32 [#allocation8], 4
      %s71 = int_to_ptr.vmem [resolvable:$true] %s70
      %76 = dma.hbm_to_vmem [thread:$0]  %s69, 512, %s71, [#allocation9], 128, 128, 8
    $region17: #{tpu_custom_call.1} parent=1 // pred_fallthru
      _
    // Predicated region
    $region18: #{tpu_custom_call.1} parent=1 // pred_check
      _
    $region19: #{tpu_custom_call.1} parent=1 // pred_check_branch
      %78 = sbr.rel (0) target = $region21
    $region20: #{tpu_custom_call.1} parent=1 // pred_region
      %79 = dma.done [#allocation3], 16
    $region21: #{tpu_custom_call.1} parent=1 // pred_fallthru
      _
    // Predicated region
    $region22: #{tpu_custom_call.1} parent=1 // pred_check
      _
    $region23: #{tpu_custom_call.1} parent=1 // pred_check_branch
      %81 = sbr.rel (0) target = $region25
    $region24: #{tpu_custom_call.1} parent=1 // pred_region
      %82 = dma.done [#allocation6], 512
    $region25: #{tpu_custom_call.1} parent=1 // pred_fallthru
      _
    // Predicated region
    $region26: #{tpu_custom_call.1} parent=1 // pred_check
      _
    $region27: #{tpu_custom_call.1} parent=1 // pred_check_branch
      %84 = sbr.rel (0) target = $region29
    $region28: #{tpu_custom_call.1} parent=1 // pred_region
      %85 = dma.done [#allocation6], 512
    $region29: #{tpu_custom_call.1} parent=1 // pred_fallthru
      _
    // Predicated region
    $region30: #{tpu_custom_call.1} parent=1 // pred_check
      _
    $region31: #{tpu_custom_call.1} parent=1 // pred_check_branch
      %87 = sbr.rel (0) target = $region33
    $region32: #{tpu_custom_call.1} parent=1 // pred_region
      %88 = dma.done [#allocation9], 512
    $region33: #{tpu_custom_call.1} parent=1 // pred_fallthru
      _
    %s89 = sadd.s32 0, 0
    %s90 = sadd.s32 0, 0
    %s91 = smul.u32 4, %s90
    %s92 = sadd.s32 0, 0
    %s93 = smul.u32 4, %s92
    %s94 = sadd.s32 0, 0
    %s95 = smul.u32 4, %s94
    %p96 = scmp.eq.s32.totalorder 0, 0
    // Predicated region
    $region34: #{tpu_custom_call.1} parent=1 // pred_check
      %p97 = pneg %p96
    $region35: #{tpu_custom_call.1} parent=1 // pred_check_branch
      %99 = sbr.rel (%p97) target = $region37
    $region36: #{tpu_custom_call.1} parent=1 // pred_region
      %vm100 = vcmask 253952
      %101 = vst.msk [vmem:[#allocation10] sm:$0x1] %vm100, 0.0
      %102 = vst.msk [vmem:[#allocation11] sm:$0x1] %vm100, 0.0
    $region37: #{tpu_custom_call.1} parent=1 // pred_fallthru
      _
    %v103 = vld [vmem:[#allocation8] sm:$0xff]
    %v104 = vld [vmem:[#allocation8 + $0x8] sm:$0xff]
    %v105 = vld [vmem:[#allocation8 + $0x10] sm:$0xff]
    %v106 = vld [vmem:[#allocation8 + $0x18] sm:$0xff]
    %v107 = vld [vmem:[#allocation5] sm:$0xff]
    %v108 = vld [vmem:[#allocation5 + $0x8] sm:$0xff]
    %v109 = vld [vmem:[#allocation5 + $0x10] sm:$0xff]
    %v110 = vld [vmem:[#allocation5 + $0x18] sm:$0xff]
    %v111 = vsub.f32 %v107, %v103
    %v112 = vsub.f32 %v108, %v104
    %v113 = vsub.f32 %v109, %v105
    %v114 = vsub.f32 %v110, %v106
    %v115 = vand.u32 2147483647, %v111
    %v116 = vand.u32 2147483647, %v112
    %v117 = vand.u32 2147483647, %v113
    %v118 = vand.u32 2147483647, %v114
    %v119 = vld [vmem:[#allocation7] sm:$0xff]
    %v120 = vld [vmem:[#allocation7 + $0x8] sm:$0xff]
    %v121 = vld [vmem:[#allocation7 + $0x10] sm:$0xff]
    %v122 = vld [vmem:[#allocation7 + $0x18] sm:$0xff]
    %v123 = vsub.f32 %v119, %v103
    %v124 = vsub.f32 %v120, %v104
    %v125 = vsub.f32 %v121, %v105
    %v126 = vsub.f32 %v122, %v106
    %v127 = vand.u32 2147483647, %v123
    %v128 = vand.u32 2147483647, %v124
    %v129 = vand.u32 2147483647, %v125
    %v130 = vand.u32 2147483647, %v126
    %v131 = vld [vmem:[#allocation2] sm:$0x1]
    %v132 = vld [vmem:[#allocation10] sm:$0x1]
    %vm133 = vcmask 261120
    %v135 = vsel %vm133, %v131, 0
    %137 = vmatprep.subr.mxu0 0.0
    %138 = vmatpush1.msra.mxu0 0.0
    %139 = vmatprep.subr.mxu0 0.0
    %140 = vmatpush1.msra.mxu0 0.0
    %141 = vmatprep.subr.mxu0 0.0
    %142 = vmatpush1.msra.mxu0 0.0
    %143 = vmatprep.subr.mxu0 0.0
    %144 = vmatpush1.msra.mxu0 0.0
    %145 = vmatprep.subr.mxu0 0.0
    %146 = vmatpush1.msra.mxu0 0.0
    %147 = vmatprep.subr.mxu0 0.0
    %148 = vmatpush1.msra.mxu0 0.0
    %149 = vmatprep.subr.mxu0 0.0
    %150 = vmatpush1.msra.mxu0 0.0
    %151 = vmatprep.subr.mxu0 0.0
    %152 = vmatpush1.msra.mxu0 0.0
    %153 = vmatprep.subr.mxu0 0.0
    %154 = vmatpush1.msra.mxu0 0.0
    %155 = vmatprep.subr.mxu0 0.0
    %156 = vmatpush1.msra.mxu0 0.0
    %157 = vmatprep.subr.mxu0 0.0
    %158 = vmatpush1.msra.mxu0 0.0
    %159 = vmatprep.subr.mxu0 0.0
    %160 = vmatpush1.msra.mxu0 0.0
    %161 = vmatprep.subr.mxu0 0.0
    %v162 = vand.u32 %v118, 4294901760
    %163 = vmatpush1.msra.mxu0 %v162
    %164 = vmatprep.subr.mxu0 0.0
    %v165 = vand.u32 %v117, 4294901760
    %166 = vmatpush1.msra.mxu0 %v165
    %167 = vmatprep.subr.mxu0 0.0
    %v168 = vand.u32 %v116, 4294901760
    %169 = vmatpush1.msra.mxu0 %v168
    %170 = vmatprep.subr.mxu0 0.0
    %v171 = vand.u32 %v115, 4294901760
    %172 = vmatpush1.msra.mxu0 %v171
    %173 = vmatprep.subr.mxu0 0.0
    %174 = vmatpush2.msra.mxu0 0.0
    %175 = vmatprep.subr.mxu0 0.0
    %176 = vmatpush2.msra.mxu0 0.0
    %177 = vmatprep.subr.mxu0 0.0
    %178 = vmatpush2.msra.mxu0 0.0
    %179 = vmatprep.subr.mxu0 0.0
    %180 = vmatpush2.msra.mxu0 0.0
    %181 = vmatprep.subr.mxu0 0.0
    %182 = vmatpush2.msra.mxu0 0.0
    %183 = vmatprep.subr.mxu0 0.0
    %184 = vmatpush2.msra.mxu0 0.0
    %185 = vmatprep.subr.mxu0 0.0
    %186 = vmatpush2.msra.mxu0 0.0
    %187 = vmatprep.subr.mxu0 0.0
    %188 = vmatpush2.msra.mxu0 0.0
    %189 = vmatprep.subr.mxu0 0.0
    %190 = vmatpush2.msra.mxu0 0.0
    %191 = vmatprep.subr.mxu0 0.0
    %192 = vmatpush2.msra.mxu0 0.0
    %193 = vmatprep.subr.mxu0 0.0
    %194 = vmatpush2.msra.mxu0 0.0
    %195 = vmatprep.subr.mxu0 0.0
    %196 = vmatpush2.msra.mxu0 0.0
    %197 = vmatprep.subr.mxu0 0.0
    %198 = vmatpush2.msra.mxu0 0.0
    %199 = vmatprep.subr.mxu0 0.0
    %200 = vmatpush2.msra.mxu0 0.0
    %201 = vmatprep.subr.mxu0 0.0
    %202 = vmatpush2.msra.mxu0 0.0
    %203 = vmatprep.subr.mxu0 0.0
    %204 = vmatpush2.msra.mxu0 0.0
    %205 = vmatprep.mubr.f32.mxu0 0.0
    %v206 = vand.u32 %v135, 4294901760
    %v207 = vsub.f32 %v135, %v206
    %v208 = vand.u32 %v207, 4294901760
    %v209 = vsub.f32 %v207, %v208
    %v210 = vand.u32 %v209, 4294901760
    %211 = vmatmul.mubr.f32.gmra.mxu0 %v210
    %v212 = vpop.f32.mrf.mxu0
    %v213 = vadd.f32 0.0, %v212
    %v214 = vpop.f32.mrf.mxu0
    %215 = vdwg.mxu0
    %216 = vmatprep.subr.mxu0 0.0
    %217 = vmatpush1.msra.mxu0 0.0
    %218 = vmatprep.subr.mxu0 0.0
    %219 = vmatpush1.msra.mxu0 0.0
    %220 = vmatprep.subr.mxu0 0.0
    %221 = vmatpush1.msra.mxu0 0.0
    %222 = vmatprep.subr.mxu0 0.0
    %223 = vmatpush1.msra.mxu0 0.0
    %224 = vmatprep.subr.mxu0 0.0
    %225 = vmatpush1.msra.mxu0 0.0
    %226 = vmatprep.subr.mxu0 0.0
    %227 = vmatpush1.msra.mxu0 0.0
    %228 = vmatprep.subr.mxu0 0.0
    %229 = vmatpush1.msra.mxu0 0.0
    %230 = vmatprep.subr.mxu0 0.0
    %231 = vmatpush1.msra.mxu0 0.0
    %232 = vmatprep.subr.mxu0 0.0
    %233 = vmatpush1.msra.mxu0 0.0
    %234 = vmatprep.subr.mxu0 0.0
    %235 = vmatpush1.msra.mxu0 0.0
    %236 = vmatprep.subr.mxu0 0.0
    %237 = vmatpush1.msra.mxu0 0.0
    %238 = vmatprep.subr.mxu0 0.0
    %239 = vmatpush1.msra.mxu0 0.0
    %240 = vmatprep.subr.mxu0 0.0
    %v241 = vand.u32 %v118, 4294901760
    %v242 = vsub.f32 %v118, %v241
    %v243 = vand.u32 %v242, 4294901760
    %v244 = vsub.f32 %v242, %v243
    %v245 = vand.u32 %v244, 4294901760
    %246 = vmatpush1.msra.mxu0 %v245
    %247 = vmatprep.subr.mxu0 0.0
    %v248 = vand.u32 %v117, 4294901760
    %v249 = vsub.f32 %v117, %v248
    %v250 = vand.u32 %v249, 4294901760
    %v251 = vsub.f32 %v249, %v250
    %v252 = vand.u32 %v251, 4294901760
    %253 = vmatpush1.msra.mxu0 %v252
    %254 = vmatprep.subr.mxu0 0.0
    %v255 = vand.u32 %v116, 4294901760
    %v256 = vsub.f32 %v116, %v255
    %v257 = vand.u32 %v256, 4294901760
    %v258 = vsub.f32 %v256, %v257
    %v259 = vand.u32 %v258, 4294901760
    %260 = vmatpush1.msra.mxu0 %v259
    %261 = vmatprep.subr.mxu0 0.0
    %v262 = vand.u32 %v115, 4294901760
    %v263 = vsub.f32 %v115, %v262
    %v264 = vand.u32 %v263, 4294901760
    %v265 = vsub.f32 %v263, %v264
    %v266 = vand.u32 %v265, 4294901760
    %267 = vmatpush1.msra.mxu0 %v266
    %268 = vmatprep.subr.mxu0 0.0
    %269 = vmatpush2.msra.mxu0 0.0
    %270 = vmatprep.subr.mxu0 0.0
    %271 = vmatpush2.msra.mxu0 0.0
    %272 = vmatprep.subr.mxu0 0.0
    %273 = vmatpush2.msra.mxu0 0.0
    %274 = vmatprep.subr.mxu0 0.0
    %275 = vmatpush2.msra.mxu0 0.0
    %276 = vmatprep.subr.mxu0 0.0
    %277 = vmatpush2.msra.mxu0 0.0
    %278 = vmatprep.subr.mxu0 0.0
    %279 = vmatpush2.msra.mxu0 0.0
    %280 = vmatprep.subr.mxu0 0.0
    %281 = vmatpush2.msra.mxu0 0.0
    %282 = vmatprep.subr.mxu0 0.0
    %283 = vmatpush2.msra.mxu0 0.0
    %284 = vmatprep.subr.mxu0 0.0
    %285 = vmatpush2.msra.mxu0 0.0
    %286 = vmatprep.subr.mxu0 0.0
    %287 = vmatpush2.msra.mxu0 0.0
    %288 = vmatprep.subr.mxu0 0.0
    %289 = vmatpush2.msra.mxu0 0.0
    %290 = vmatprep.subr.mxu0 0.0
    %291 = vmatpush2.msra.mxu0 0.0
    %292 = vmatprep.subr.mxu0 0.0
    %293 = vmatpush2.msra.mxu0 0.0
    %294 = vmatprep.subr.mxu0 0.0
    %295 = vmatpush2.msra.mxu0 0.0
    %296 = vmatprep.subr.mxu0 0.0
    %297 = vmatpush2.msra.mxu0 0.0
    %298 = vmatprep.subr.mxu0 0.0
    %299 = vmatpush2.msra.mxu0 0.0
    %300 = vmatprep.mubr.f32.mxu0 0.0
    %v301 = vand.u32 %v135, 4294901760
    %302 = vmatmul.mubr.f32.gmra.mxu0 %v301
    %v303 = vpop.f32.mrf.mxu0
    %v304 = vadd.f32 %v213, %v303
    %v305 = vpop.f32.mrf.mxu0
    %306 = vdwg.mxu0
    %307 = vmatprep.subr.mxu0 0.0
    %308 = vmatpush1.msra.mxu0 0.0
    %309 = vmatprep.subr.mxu0 0.0
    %310 = vmatpush1.msra.mxu0 0.0
    %311 = vmatprep.subr.mxu0 0.0
    %312 = vmatpush1.msra.mxu0 0.0
    %313 = vmatprep.subr.mxu0 0.0
    %314 = vmatpush1.msra.mxu0 0.0
    %315 = vmatprep.subr.mxu0 0.0
    %316 = vmatpush1.msra.mxu0 0.0
    %317 = vmatprep.subr.mxu0 0.0
    %318 = vmatpush1.msra.mxu0 0.0
    %319 = vmatprep.subr.mxu0 0.0
    %320 = vmatpush1.msra.mxu0 0.0
    %321 = vmatprep.subr.mxu0 0.0
    %322 = vmatpush1.msra.mxu0 0.0
    %323 = vmatprep.subr.mxu0 0.0
    %324 = vmatpush1.msra.mxu0 0.0
    %325 = vmatprep.subr.mxu0 0.0
    %326 = vmatpush1.msra.mxu0 0.0
    %327 = vmatprep.subr.mxu0 0.0
    %328 = vmatpush1.msra.mxu0 0.0
    %329 = vmatprep.subr.mxu0 0.0
    %330 = vmatpush1.msra.mxu0 0.0
    %331 = vmatprep.subr.mxu0 0.0
    %v332 = vand.u32 %v118, 4294901760
    %v333 = vsub.f32 %v118, %v332
    %334 = vmatpush1.msra.mxu0 %v333
    %335 = vmatprep.subr.mxu0 0.0
    %v336 = vand.u32 %v117, 4294901760
    %v337 = vsub.f32 %v117, %v336
    %338 = vmatpush1.msra.mxu0 %v337
    %339 = vmatprep.subr.mxu0 0.0
    %v340 = vand.u32 %v116, 4294901760
    %v341 = vsub.f32 %v116, %v340
    %342 = vmatpush1.msra.mxu0 %v341
    %343 = vmatprep.subr.mxu0 0.0
    %v344 = vand.u32 %v115, 4294901760
    %v345 = vsub.f32 %v115, %v344
    %346 = vmatpush1.msra.mxu0 %v345
    %347 = vmatprep.subr.mxu0 0.0
    %348 = vmatpush2.msra.mxu0 0.0
    %349 = vmatprep.subr.mxu0 0.0
    %350 = vmatpush2.msra.mxu0 0.0
    %351 = vmatprep.subr.mxu0 0.0
    %352 = vmatpush2.msra.mxu0 0.0
    %353 = vmatprep.subr.mxu0 0.0
    %354 = vmatpush2.msra.mxu0 0.0
    %355 = vmatprep.subr.mxu0 0.0
    %356 = vmatpush2.msra.mxu0 0.0
    %357 = vmatprep.subr.mxu0 0.0
    %358 = vmatpush2.msra.mxu0 0.0
    %359 = vmatprep.subr.mxu0 0.0
    %360 = vmatpush2.msra.mxu0 0.0
    %361 = vmatprep.subr.mxu0 0.0
    %362 = vmatpush2.msra.mxu0 0.0
    %363 = vmatprep.subr.mxu0 0.0
    %364 = vmatpush2.msra.mxu0 0.0
    %365 = vmatprep.subr.mxu0 0.0
    %366 = vmatpush2.msra.mxu0 0.0
    %367 = vmatprep.subr.mxu0 0.0
    %368 = vmatpush2.msra.mxu0 0.0
    %369 = vmatprep.subr.mxu0 0.0
    %370 = vmatpush2.msra.mxu0 0.0
    %371 = vmatprep.subr.mxu0 0.0
    %372 = vmatpush2.msra.mxu0 0.0
    %373 = vmatprep.subr.mxu0 0.0
    %374 = vmatpush2.msra.mxu0 0.0
    %375 = vmatprep.subr.mxu0 0.0
    %376 = vmatpush2.msra.mxu0 0.0
    %377 = vmatprep.subr.mxu0 0.0
    %378 = vmatpush2.msra.mxu0 0.0
    %379 = vmatprep.mubr.f32.mxu0 0.0
    %v380 = vand.u32 %v135, 4294901760
    %v381 = vsub.f32 %v135, %v380
    %382 = vmatmul.mubr.f32.gmra.mxu0 %v381
    %v383 = vpop.f32.mrf.mxu0
    %v384 = vadd.f32 %v304, %v383
    %v385 = vpop.f32.mrf.mxu0
    %386 = vdwg.mxu0
    %387 = vmatprep.subr.mxu0 0.0
    %388 = vmatpush1.msra.mxu0 0.0
    %389 = vmatprep.subr.mxu0 0.0
    %390 = vmatpush1.msra.mxu0 0.0
    %391 = vmatprep.subr.mxu0 0.0
    %392 = vmatpush1.msra.mxu0 0.0
    %393 = vmatprep.subr.mxu0 0.0
    %394 = vmatpush1.msra.mxu0 0.0
    %395 = vmatprep.subr.mxu0 0.0
    %396 = vmatpush1.msra.mxu0 0.0
    %397 = vmatprep.subr.mxu0 0.0
    %398 = vmatpush1.msra.mxu0 0.0
    %399 = vmatprep.subr.mxu0 0.0
    %400 = vmatpush1.msra.mxu0 0.0
    %401 = vmatprep.subr.mxu0 0.0
    %402 = vmatpush1.msra.mxu0 0.0
    %403 = vmatprep.subr.mxu0 0.0
    %404 = vmatpush1.msra.mxu0 0.0
    %405 = vmatprep.subr.mxu0 0.0
    %406 = vmatpush1.msra.mxu0 0.0
    %407 = vmatprep.subr.mxu0 0.0
    %408 = vmatpush1.msra.mxu0 0.0
    %409 = vmatprep.subr.mxu0 0.0
    %410 = vmatpush1.msra.mxu0 0.0
    %411 = vmatprep.subr.mxu0 0.0
    %v412 = vand.u32 %v118, 4294901760
    %413 = vmatpush1.msra.mxu0 %v412
    %414 = vmatprep.subr.mxu0 0.0
    %v415 = vand.u32 %v117, 4294901760
    %416 = vmatpush1.msra.mxu0 %v415
    %417 = vmatprep.subr.mxu0 0.0
    %v418 = vand.u32 %v116, 4294901760
    %419 = vmatpush1.msra.mxu0 %v418
    %420 = vmatprep.subr.mxu0 0.0
    %v421 = vand.u32 %v115, 4294901760
    %422 = vmatpush1.msra.mxu0 %v421
    %423 = vmatprep.subr.mxu0 0.0
    %424 = vmatpush2.msra.mxu0 0.0
    %425 = vmatprep.subr.mxu0 0.0
    %426 = vmatpush2.msra.mxu0 0.0
    %427 = vmatprep.subr.mxu0 0.0
    %428 = vmatpush2.msra.mxu0 0.0
    %429 = vmatprep.subr.mxu0 0.0
    %430 = vmatpush2.msra.mxu0 0.0
    %431 = vmatprep.subr.mxu0 0.0
    %432 = vmatpush2.msra.mxu0 0.0
    %433 = vmatprep.subr.mxu0 0.0
    %434 = vmatpush2.msra.mxu0 0.0
    %435 = vmatprep.subr.mxu0 0.0
    %436 = vmatpush2.msra.mxu0 0.0
    %437 = vmatprep.subr.mxu0 0.0
    %438 = vmatpush2.msra.mxu0 0.0
    %439 = vmatprep.subr.mxu0 0.0
    %440 = vmatpush2.msra.mxu0 0.0
    %441 = vmatprep.subr.mxu0 0.0
    %442 = vmatpush2.msra.mxu0 0.0
    %443 = vmatprep.subr.mxu0 0.0
    %444 = vmatpush2.msra.mxu0 0.0
    %445 = vmatprep.subr.mxu0 0.0
    %446 = vmatpush2.msra.mxu0 0.0
    %447 = vmatprep.subr.mxu0 0.0
    %448 = vmatpush2.msra.mxu0 0.0
    %449 = vmatprep.subr.mxu0 0.0
    %450 = vmatpush2.msra.mxu0 0.0
    %451 = vmatprep.subr.mxu0 0.0
    %452 = vmatpush2.msra.mxu0 0.0
    %453 = vmatprep.subr.mxu0 0.0
    %454 = vmatpush2.msra.mxu0 0.0
    %455 = vmatprep.mubr.f32.mxu0 0.0
    %v456 = vand.u32 %v135, 4294901760
    %v457 = vsub.f32 %v135, %v456
    %v458 = vand.u32 %v457, 4294901760
    %459 = vmatmul.mubr.f32.gmra.mxu0 %v458
    %v460 = vpop.f32.mrf.mxu0
    %v461 = vadd.f32 %v384, %v460
    %v462 = vpop.f32.mrf.mxu0
    %463 = vdwg.mxu0
    %464 = vmatprep.subr.mxu0 0.0
    %465 = vmatpush1.msra.mxu0 0.0
    %466 = vmatprep.subr.mxu0 0.0
    %467 = vmatpush1.msra.mxu0 0.0
    %468 = vmatprep.subr.mxu0 0.0
    %469 = vmatpush1.msra.mxu0 0.0
    %470 = vmatprep.subr.mxu0 0.0
    %471 = vmatpush1.msra.mxu0 0.0
    %472 = vmatprep.subr.mxu0 0.0
    %473 = vmatpush1.msra.mxu0 0.0
    %474 = vmatprep.subr.mxu0 0.0
    %475 = vmatpush1.msra.mxu0 0.0
    %476 = vmatprep.subr.mxu0 0.0
    %477 = vmatpush1.msra.mxu0 0.0
    %478 = vmatprep.subr.mxu0 0.0
    %479 = vmatpush1.msra.mxu0 0.0
    %480 = vmatprep.subr.mxu0 0.0
    %481 = vmatpush1.msra.mxu0 0.0
    %482 = vmatprep.subr.mxu0 0.0
    %483 = vmatpush1.msra.mxu0 0.0
    %484 = vmatprep.subr.mxu0 0.0
    %485 = vmatpush1.msra.mxu0 0.0
    %486 = vmatprep.subr.mxu0 0.0
    %487 = vmatpush1.msra.mxu0 0.0
    %488 = vmatprep.subr.mxu0 0.0
    %v489 = vand.u32 %v118, 4294901760
    %v490 = vsub.f32 %v118, %v489
    %v491 = vand.u32 %v490, 4294901760
    %492 = vmatpush1.msra.mxu0 %v491
    %493 = vmatprep.subr.mxu0 0.0
    %v494 = vand.u32 %v117, 4294901760
    %v495 = vsub.f32 %v117, %v494
    %v496 = vand.u32 %v495, 4294901760
    %497 = vmatpush1.msra.mxu0 %v496
    %498 = vmatprep.subr.mxu0 0.0
    %v499 = vand.u32 %v116, 4294901760
    %v500 = vsub.f32 %v116, %v499
    %v501 = vand.u32 %v500, 4294901760
    %502 = vmatpush1.msra.mxu0 %v501
    %503 = vmatprep.subr.mxu0 0.0
    %v504 = vand.u32 %v115, 4294901760
    %v505 = vsub.f32 %v115, %v504
    %v506 = vand.u32 %v505, 4294901760
    %507 = vmatpush1.msra.mxu0 %v506
    %508 = vmatprep.subr.mxu0 0.0
    %509 = vmatpush2.msra.mxu0 0.0
    %510 = vmatprep.subr.mxu0 0.0
    %511 = vmatpush2.msra.mxu0 0.0
    %512 = vmatprep.subr.mxu0 0.0
    %513 = vmatpush2.msra.mxu0 0.0
    %514 = vmatprep.subr.mxu0 0.0
    %515 = vmatpush2.msra.mxu0 0.0
    %516 = vmatprep.subr.mxu0 0.0
    %517 = vmatpush2.msra.mxu0 0.0
    %518 = vmatprep.subr.mxu0 0.0
    %519 = vmatpush2.msra.mxu0 0.0
    %520 = vmatprep.subr.mxu0 0.0
    %521 = vmatpush2.msra.mxu0 0.0
    %522 = vmatprep.subr.mxu0 0.0
    %523 = vmatpush2.msra.mxu0 0.0
    %524 = vmatprep.subr.mxu0 0.0
    %525 = vmatpush2.msra.mxu0 0.0
    %526 = vmatprep.subr.mxu0 0.0
    %527 = vmatpush2.msra.mxu0 0.0
    %528 = vmatprep.subr.mxu0 0.0
    %529 = vmatpush2.msra.mxu0 0.0
    %530 = vmatprep.subr.mxu0 0.0
    %531 = vmatpush2.msra.mxu0 0.0
    %532 = vmatprep.subr.mxu0 0.0
    %533 = vmatpush2.msra.mxu0 0.0
    %534 = vmatprep.subr.mxu0 0.0
    %535 = vmatpush2.msra.mxu0 0.0
    %536 = vmatprep.subr.mxu0 0.0
    %537 = vmatpush2.msra.mxu0 0.0
    %538 = vmatprep.subr.mxu0 0.0
    %539 = vmatpush2.msra.mxu0 0.0
    %540 = vmatprep.mubr.f32.mxu0 0.0
    %v541 = vand.u32 %v135, 4294901760
    %542 = vmatmul.mubr.f32.gmra.mxu0 %v541
    %v543 = vpop.f32.mrf.mxu0
    %v544 = vadd.f32 %v461, %v543
    %v545 = vpop.f32.mrf.mxu0
    %546 = vdwg.mxu0
    %547 = vmatprep.subr.mxu0 0.0
    %548 = vmatpush1.msra.mxu0 0.0
    %549 = vmatprep.subr.mxu0 0.0
    %550 = vmatpush1.msra.mxu0 0.0
    %551 = vmatprep.subr.mxu0 0.0
    %552 = vmatpush1.msra.mxu0 0.0
    %553 = vmatprep.subr.mxu0 0.0
    %554 = vmatpush1.msra.mxu0 0.0
    %555 = vmatprep.subr.mxu0 0.0
    %556 = vmatpush1.msra.mxu0 0.0
    %557 = vmatprep.subr.mxu0 0.0
    %558 = vmatpush1.msra.mxu0 0.0
    %559 = vmatprep.subr.mxu0 0.0
    %560 = vmatpush1.msra.mxu0 0.0
    %561 = vmatprep.subr.mxu0 0.0
    %562 = vmatpush1.msra.mxu0 0.0
    %563 = vmatprep.subr.mxu0 0.0
    %564 = vmatpush1.msra.mxu0 0.0
    %565 = vmatprep.subr.mxu0 0.0
    %566 = vmatpush1.msra.mxu0 0.0
    %567 = vmatprep.subr.mxu0 0.0
    %568 = vmatpush1.msra.mxu0 0.0
    %569 = vmatprep.subr.mxu0 0.0
    %570 = vmatpush1.msra.mxu0 0.0
    %571 = vmatprep.subr.mxu0 0.0
    %v572 = vand.u32 %v118, 4294901760
    %573 = vmatpush1.msra.mxu0 %v572
    %574 = vmatprep.subr.mxu0 0.0
    %v575 = vand.u32 %v117, 4294901760
    %576 = vmatpush1.msra.mxu0 %v575
    %577 = vmatprep.subr.mxu0 0.0
    %v578 = vand.u32 %v116, 4294901760
    %579 = vmatpush1.msra.mxu0 %v578
    %580 = vmatprep.subr.mxu0 0.0
    %v581 = vand.u32 %v115, 4294901760
    %582 = vmatpush1.msra.mxu0 %v581
    %583 = vmatprep.subr.mxu0 0.0
    %584 = vmatpush2.msra.mxu0 0.0
    %585 = vmatprep.subr.mxu0 0.0
    %586 = vmatpush2.msra.mxu0 0.0
    %587 = vmatprep.subr.mxu0 0.0
    %588 = vmatpush2.msra.mxu0 0.0
    %589 = vmatprep.subr.mxu0 0.0
    %590 = vmatpush2.msra.mxu0 0.0
    %591 = vmatprep.subr.mxu0 0.0
    %592 = vmatpush2.msra.mxu0 0.0
    %593 = vmatprep.subr.mxu0 0.0
    %594 = vmatpush2.msra.mxu0 0.0
    %595 = vmatprep.subr.mxu0 0.0
    %596 = vmatpush2.msra.mxu0 0.0
    %597 = vmatprep.subr.mxu0 0.0
    %598 = vmatpush2.msra.mxu0 0.0
    %599 = vmatprep.subr.mxu0 0.0
    %600 = vmatpush2.msra.mxu0 0.0
    %601 = vmatprep.subr.mxu0 0.0
    %602 = vmatpush2.msra.mxu0 0.0
    %603 = vmatprep.subr.mxu0 0.0
    %604 = vmatpush2.msra.mxu0 0.0
    %605 = vmatprep.subr.mxu0 0.0
    %606 = vmatpush2.msra.mxu0 0.0
    %607 = vmatprep.subr.mxu0 0.0
    %608 = vmatpush2.msra.mxu0 0.0
    %609 = vmatprep.subr.mxu0 0.0
    %610 = vmatpush2.msra.mxu0 0.0
    %611 = vmatprep.subr.mxu0 0.0
    %612 = vmatpush2.msra.mxu0 0.0
    %613 = vmatprep.subr.mxu0 0.0
    %614 = vmatpush2.msra.mxu0 0.0
    %615 = vmatprep.mubr.f32.mxu0 0.0
    %v616 = vand.u32 %v135, 4294901760
    %617 = vmatmul.mubr.f32.gmra.mxu0 %v616
    %v618 = vpop.f32.mrf.mxu0
    %v619 = vadd.f32 %v544, %v618
    %v620 = vpop.f32.mrf.mxu0
    %621 = vdwg.mxu0
    %v622 = vadd.f32 %v132, %v619
    %vm623 = vcmask 253952
    %624 = vst.msk [vmem:[#allocation10] sm:$0x1] %vm623, %v622
    %v625 = vld [vmem:[#allocation11] sm:$0x1]
    %626 = vmatprep.subr.mxu0 0.0
    %627 = vmatpush1.msra.mxu0 0.0
    %628 = vmatprep.subr.mxu0 0.0
    %629 = vmatpush1.msra.mxu0 0.0
    %630 = vmatprep.subr.mxu0 0.0
    %631 = vmatpush1.msra.mxu0 0.0
    %632 = vmatprep.subr.mxu0 0.0
    %633 = vmatpush1.msra.mxu0 0.0
    %634 = vmatprep.subr.mxu0 0.0
    %635 = vmatpush1.msra.mxu0 0.0
    %636 = vmatprep.subr.mxu0 0.0
    %637 = vmatpush1.msra.mxu0 0.0
    %638 = vmatprep.subr.mxu0 0.0
    %639 = vmatpush1.msra.mxu0 0.0
    %640 = vmatprep.subr.mxu0 0.0
    %641 = vmatpush1.msra.mxu0 0.0
    %642 = vmatprep.subr.mxu0 0.0
    %643 = vmatpush1.msra.mxu0 0.0
    %644 = vmatprep.subr.mxu0 0.0
    %645 = vmatpush1.msra.mxu0 0.0
    %646 = vmatprep.subr.mxu0 0.0
    %647 = vmatpush1.msra.mxu0 0.0
    %648 = vmatprep.subr.mxu0 0.0
    %649 = vmatpush1.msra.mxu0 0.0
    %650 = vmatprep.subr.mxu0 0.0
    %v651 = vand.u32 %v130, 4294901760
    %652 = vmatpush1.msra.mxu0 %v651
    %653 = vmatprep.subr.mxu0 0.0
    %v654 = vand.u32 %v129, 4294901760
    %655 = vmatpush1.msra.mxu0 %v654
    %656 = vmatprep.subr.mxu0 0.0
    %v657 = vand.u32 %v128, 4294901760
    %658 = vmatpush1.msra.mxu0 %v657
    %659 = vmatprep.subr.mxu0 0.0
    %v660 = vand.u32 %v127, 4294901760
    %661 = vmatpush1.msra.mxu0 %v660
    %662 = vmatprep.subr.mxu0 0.0
    %663 = vmatpush2.msra.mxu0 0.0
    %664 = vmatprep.subr.mxu0 0.0
    %665 = vmatpush2.msra.mxu0 0.0
    %666 = vmatprep.subr.mxu0 0.0
    %667 = vmatpush2.msra.mxu0 0.0
    %668 = vmatprep.subr.mxu0 0.0
    %669 = vmatpush2.msra.mxu0 0.0
    %670 = vmatprep.subr.mxu0 0.0
    %671 = vmatpush2.msra.mxu0 0.0
    %672 = vmatprep.subr.mxu0 0.0
    %673 = vmatpush2.msra.mxu0 0.0
    %674 = vmatprep.subr.mxu0 0.0
    %675 = vmatpush2.msra.mxu0 0.0
    %676 = vmatprep.subr.mxu0 0.0
    %677 = vmatpush2.msra.mxu0 0.0
    %678 = vmatprep.subr.mxu0 0.0
    %679 = vmatpush2.msra.mxu0 0.0
    %680 = vmatprep.subr.mxu0 0.0
    %681 = vmatpush2.msra.mxu0 0.0
    %682 = vmatprep.subr.mxu0 0.0
    %683 = vmatpush2.msra.mxu0 0.0
    %684 = vmatprep.subr.mxu0 0.0
    %685 = vmatpush2.msra.mxu0 0.0
    %686 = vmatprep.subr.mxu0 0.0
    %687 = vmatpush2.msra.mxu0 0.0
    %688 = vmatprep.subr.mxu0 0.0
    %689 = vmatpush2.msra.mxu0 0.0
    %690 = vmatprep.subr.mxu0 0.0
    %691 = vmatpush2.msra.mxu0 0.0
    %692 = vmatprep.subr.mxu0 0.0
    %693 = vmatpush2.msra.mxu0 0.0
    %694 = vmatprep.mubr.f32.mxu0 0.0
    %v695 = vand.u32 %v135, 4294901760
    %v696 = vsub.f32 %v135, %v695
    %v697 = vand.u32 %v696, 4294901760
    %v698 = vsub.f32 %v696, %v697
    %v699 = vand.u32 %v698, 4294901760
    %700 = vmatmul.mubr.f32.gmra.mxu0 %v699
    %v701 = vpop.f32.mrf.mxu0
    %v702 = vadd.f32 0.0, %v701
    %v703 = vpop.f32.mrf.mxu0
    %704 = vdwg.mxu0
    %705 = vmatprep.subr.mxu0 0.0
    %706 = vmatpush1.msra.mxu0 0.0
    %707 = vmatprep.subr.mxu0 0.0
    %708 = vmatpush1.msra.mxu0 0.0
    %709 = vmatprep.subr.mxu0 0.0
    %710 = vmatpush1.msra.mxu0 0.0
    %711 = vmatprep.subr.mxu0 0.0
    %712 = vmatpush1.msra.mxu0 0.0
    %713 = vmatprep.subr.mxu0 0.0
    %714 = vmatpush1.msra.mxu0 0.0
    %715 = vmatprep.subr.mxu0 0.0
    %716 = vmatpush1.msra.mxu0 0.0
    %717 = vmatprep.subr.mxu0 0.0
    %718 = vmatpush1.msra.mxu0 0.0
    %719 = vmatprep.subr.mxu0 0.0
    %720 = vmatpush1.msra.mxu0 0.0
    %721 = vmatprep.subr.mxu0 0.0
    %722 = vmatpush1.msra.mxu0 0.0
    %723 = vmatprep.subr.mxu0 0.0
    %724 = vmatpush1.msra.mxu0 0.0
    %725 = vmatprep.subr.mxu0 0.0
    %726 = vmatpush1.msra.mxu0 0.0
    %727 = vmatprep.subr.mxu0 0.0
    %728 = vmatpush1.msra.mxu0 0.0
    %729 = vmatprep.subr.mxu0 0.0
    %v730 = vand.u32 %v130, 4294901760
    %v731 = vsub.f32 %v130, %v730
    %v732 = vand.u32 %v731, 4294901760
    %v733 = vsub.f32 %v731, %v732
    %v734 = vand.u32 %v733, 4294901760
    %735 = vmatpush1.msra.mxu0 %v734
    %736 = vmatprep.subr.mxu0 0.0
    %v737 = vand.u32 %v129, 4294901760
    %v738 = vsub.f32 %v129, %v737
    %v739 = vand.u32 %v738, 4294901760
    %v740 = vsub.f32 %v738, %v739
    %v741 = vand.u32 %v740, 4294901760
    %742 = vmatpush1.msra.mxu0 %v741
    %743 = vmatprep.subr.mxu0 0.0
    %v744 = vand.u32 %v128, 4294901760
    %v745 = vsub.f32 %v128, %v744
    %v746 = vand.u32 %v745, 4294901760
    %v747 = vsub.f32 %v745, %v746
    %v748 = vand.u32 %v747, 4294901760
    %749 = vmatpush1.msra.mxu0 %v748
    %750 = vmatprep.subr.mxu0 0.0
    %v751 = vand.u32 %v127, 4294901760
    %v752 = vsub.f32 %v127, %v751
    %v753 = vand.u32 %v752, 4294901760
    %v754 = vsub.f32 %v752, %v753
    %v755 = vand.u32 %v754, 4294901760
    %756 = vmatpush1.msra.mxu0 %v755
    %757 = vmatprep.subr.mxu0 0.0
    %758 = vmatpush2.msra.mxu0 0.0
    %759 = vmatprep.subr.mxu0 0.0
    %760 = vmatpush2.msra.mxu0 0.0
    %761 = vmatprep.subr.mxu0 0.0
    %762 = vmatpush2.msra.mxu0 0.0
    %763 = vmatprep.subr.mxu0 0.0
    %764 = vmatpush2.msra.mxu0 0.0
    %765 = vmatprep.subr.mxu0 0.0
    %766 = vmatpush2.msra.mxu0 0.0
    %767 = vmatprep.subr.mxu0 0.0
    %768 = vmatpush2.msra.mxu0 0.0
    %769 = vmatprep.subr.mxu0 0.0
    %770 = vmatpush2.msra.mxu0 0.0
    %771 = vmatprep.subr.mxu0 0.0
    %772 = vmatpush2.msra.mxu0 0.0
    %773 = vmatprep.subr.mxu0 0.0
    %774 = vmatpush2.msra.mxu0 0.0
    %775 = vmatprep.subr.mxu0 0.0
    %776 = vmatpush2.msra.mxu0 0.0
    %777 = vmatprep.subr.mxu0 0.0
    %778 = vmatpush2.msra.mxu0 0.0
    %779 = vmatprep.subr.mxu0 0.0
    %780 = vmatpush2.msra.mxu0 0.0
    %781 = vmatprep.subr.mxu0 0.0
    %782 = vmatpush2.msra.mxu0 0.0
    %783 = vmatprep.subr.mxu0 0.0
    %784 = vmatpush2.msra.mxu0 0.0
    %785 = vmatprep.subr.mxu0 0.0
    %786 = vmatpush2.msra.mxu0 0.0
    %787 = vmatprep.subr.mxu0 0.0
    %788 = vmatpush2.msra.mxu0 0.0
    %789 = vmatprep.mubr.f32.mxu0 0.0
    %v790 = vand.u32 %v135, 4294901760
    %791 = vmatmul.mubr.f32.gmra.mxu0 %v790
    %v792 = vpop.f32.mrf.mxu0
    %v793 = vadd.f32 %v702, %v792
    %v794 = vpop.f32.mrf.mxu0
    %795 = vdwg.mxu0
    %796 = vmatprep.subr.mxu0 0.0
    %797 = vmatpush1.msra.mxu0 0.0
    %798 = vmatprep.subr.mxu0 0.0
    %799 = vmatpush1.msra.mxu0 0.0
    %800 = vmatprep.subr.mxu0 0.0
    %801 = vmatpush1.msra.mxu0 0.0
    %802 = vmatprep.subr.mxu0 0.0
    %803 = vmatpush1.msra.mxu0 0.0
    %804 = vmatprep.subr.mxu0 0.0
    %805 = vmatpush1.msra.mxu0 0.0
    %806 = vmatprep.subr.mxu0 0.0
    %807 = vmatpush1.msra.mxu0 0.0
    %808 = vmatprep.subr.mxu0 0.0
    %809 = vmatpush1.msra.mxu0 0.0
    %810 = vmatprep.subr.mxu0 0.0
    %811 = vmatpush1.msra.mxu0 0.0
    %812 = vmatprep.subr.mxu0 0.0
    %813 = vmatpush1.msra.mxu0 0.0
    %814 = vmatprep.subr.mxu0 0.0
    %815 = vmatpush1.msra.mxu0 0.0
    %816 = vmatprep.subr.mxu0 0.0
    %817 = vmatpush1.msra.mxu0 0.0
    %818 = vmatprep.subr.mxu0 0.0
    %819 = vmatpush1.msra.mxu0 0.0
    %820 = vmatprep.subr.mxu0 0.0
    %v821 = vand.u32 %v130, 4294901760
    %v822 = vsub.f32 %v130, %v821
    %823 = vmatpush1.msra.mxu0 %v822
    %824 = vmatprep.subr.mxu0 0.0
    %v825 = vand.u32 %v129, 4294901760
    %v826 = vsub.f32 %v129, %v825
    %827 = vmatpush1.msra.mxu0 %v826
    %828 = vmatprep.subr.mxu0 0.0
    %v829 = vand.u32 %v128, 4294901760
    %v830 = vsub.f32 %v128, %v829
    %831 = vmatpush1.msra.mxu0 %v830
    %832 = vmatprep.subr.mxu0 0.0
    %v833 = vand.u32 %v127, 4294901760
    %v834 = vsub.f32 %v127, %v833
    %835 = vmatpush1.msra.mxu0 %v834
    %836 = vmatprep.subr.mxu0 0.0
    %837 = vmatpush2.msra.mxu0 0.0
    %838 = vmatprep.subr.mxu0 0.0
    %839 = vmatpush2.msra.mxu0 0.0
    %840 = vmatprep.subr.mxu0 0.0
    %841 = vmatpush2.msra.mxu0 0.0
    %842 = vmatprep.subr.mxu0 0.0
    %843 = vmatpush2.msra.mxu0 0.0
    %844 = vmatprep.subr.mxu0 0.0
    %845 = vmatpush2.msra.mxu0 0.0
    %846 = vmatprep.subr.mxu0 0.0
    %847 = vmatpush2.msra.mxu0 0.0
    %848 = vmatprep.subr.mxu0 0.0
    %849 = vmatpush2.msra.mxu0 0.0
    %850 = vmatprep.subr.mxu0 0.0
    %851 = vmatpush2.msra.mxu0 0.0
    %852 = vmatprep.subr.mxu0 0.0
    %853 = vmatpush2.msra.mxu0 0.0
    %854 = vmatprep.subr.mxu0 0.0
    %855 = vmatpush2.msra.mxu0 0.0
    %856 = vmatprep.subr.mxu0 0.0
    %857 = vmatpush2.msra.mxu0 0.0
    %858 = vmatprep.subr.mxu0 0.0
    %859 = vmatpush2.msra.mxu0 0.0
    %860 = vmatprep.subr.mxu0 0.0
    %861 = vmatpush2.msra.mxu0 0.0
    %862 = vmatprep.subr.mxu0 0.0
    %863 = vmatpush2.msra.mxu0 0.0
    %864 = vmatprep.subr.mxu0 0.0
    %865 = vmatpush2.msra.mxu0 0.0
    %866 = vmatprep.subr.mxu0 0.0
    %867 = vmatpush2.msra.mxu0 0.0
    %868 = vmatprep.mubr.f32.mxu0 0.0
    %v869 = vand.u32 %v135, 4294901760
    %v870 = vsub.f32 %v135, %v869
    %871 = vmatmul.mubr.f32.gmra.mxu0 %v870
    %v872 = vpop.f32.mrf.mxu0
    %v873 = vadd.f32 %v793, %v872
    %v874 = vpop.f32.mrf.mxu0
    %875 = vdwg.mxu0
    %876 = vmatprep.subr.mxu0 0.0
    %877 = vmatpush1.msra.mxu0 0.0
    %878 = vmatprep.subr.mxu0 0.0
    %879 = vmatpush1.msra.mxu0 0.0
    %880 = vmatprep.subr.mxu0 0.0
    %881 = vmatpush1.msra.mxu0 0.0
    %882 = vmatprep.subr.mxu0 0.0
    %883 = vmatpush1.msra.mxu0 0.0
    %884 = vmatprep.subr.mxu0 0.0
    %885 = vmatpush1.msra.mxu0 0.0
    %886 = vmatprep.subr.mxu0 0.0
    %887 = vmatpush1.msra.mxu0 0.0
    %888 = vmatprep.subr.mxu0 0.0
    %889 = vmatpush1.msra.mxu0 0.0
    %890 = vmatprep.subr.mxu0 0.0
    %891 = vmatpush1.msra.mxu0 0.0
    %892 = vmatprep.subr.mxu0 0.0
    %893 = vmatpush1.msra.mxu0 0.0
    %894 = vmatprep.subr.mxu0 0.0
    %895 = vmatpush1.msra.mxu0 0.0
    %896 = vmatprep.subr.mxu0 0.0
    %897 = vmatpush1.msra.mxu0 0.0
    %898 = vmatprep.subr.mxu0 0.0
    %899 = vmatpush1.msra.mxu0 0.0
    %900 = vmatprep.subr.mxu0 0.0
    %v901 = vand.u32 %v130, 4294901760
    %902 = vmatpush1.msra.mxu0 %v901
    %903 = vmatprep.subr.mxu0 0.0
    %v904 = vand.u32 %v129, 4294901760
    %905 = vmatpush1.msra.mxu0 %v904
    %906 = vmatprep.subr.mxu0 0.0
    %v907 = vand.u32 %v128, 4294901760
    %908 = vmatpush1.msra.mxu0 %v907
    %909 = vmatprep.subr.mxu0 0.0
    %v910 = vand.u32 %v127, 4294901760
    %911 = vmatpush1.msra.mxu0 %v910
    %912 = vmatprep.subr.mxu0 0.0
    %913 = vmatpush2.msra.mxu0 0.0
    %914 = vmatprep.subr.mxu0 0.0
    %915 = vmatpush2.msra.mxu0 0.0
    %916 = vmatprep.subr.mxu0 0.0
    %917 = vmatpush2.msra.mxu0 0.0
    %918 = vmatprep.subr.mxu0 0.0
    %919 = vmatpush2.msra.mxu0 0.0
    %920 = vmatprep.subr.mxu0 0.0
    %921 = vmatpush2.msra.mxu0 0.0
    %922 = vmatprep.subr.mxu0 0.0
    %923 = vmatpush2.msra.mxu0 0.0
    %924 = vmatprep.subr.mxu0 0.0
    %925 = vmatpush2.msra.mxu0 0.0
    %926 = vmatprep.subr.mxu0 0.0
    %927 = vmatpush2.msra.mxu0 0.0
    %928 = vmatprep.subr.mxu0 0.0
    %929 = vmatpush2.msra.mxu0 0.0
    %930 = vmatprep.subr.mxu0 0.0
    %931 = vmatpush2.msra.mxu0 0.0
    %932 = vmatprep.subr.mxu0 0.0
    %933 = vmatpush2.msra.mxu0 0.0
    %934 = vmatprep.subr.mxu0 0.0
    %935 = vmatpush2.msra.mxu0 0.0
    %936 = vmatprep.subr.mxu0 0.0
    %937 = vmatpush2.msra.mxu0 0.0
    %938 = vmatprep.subr.mxu0 0.0
    %939 = vmatpush2.msra.mxu0 0.0
    %940 = vmatprep.subr.mxu0 0.0
    %941 = vmatpush2.msra.mxu0 0.0
    %942 = vmatprep.subr.mxu0 0.0
    %943 = vmatpush2.msra.mxu0 0.0
    %944 = vmatprep.mubr.f32.mxu0 0.0
    %v945 = vand.u32 %v135, 4294901760
    %v946 = vsub.f32 %v135, %v945
    %v947 = vand.u32 %v946, 4294901760
    %948 = vmatmul.mubr.f32.gmra.mxu0 %v947
    %v949 = vpop.f32.mrf.mxu0
    %v950 = vadd.f32 %v873, %v949
    %v951 = vpop.f32.mrf.mxu0
    %952 = vdwg.mxu0
    %953 = vmatprep.subr.mxu0 0.0
    %954 = vmatpush1.msra.mxu0 0.0
    %955 = vmatprep.subr.mxu0 0.0
    %956 = vmatpush1.msra.mxu0 0.0
    %957 = vmatprep.subr.mxu0 0.0
    %958 = vmatpush1.msra.mxu0 0.0
    %959 = vmatprep.subr.mxu0 0.0
    %960 = vmatpush1.msra.mxu0 0.0
    %961 = vmatprep.subr.mxu0 0.0
    %962 = vmatpush1.msra.mxu0 0.0
    %963 = vmatprep.subr.mxu0 0.0
    %964 = vmatpush1.msra.mxu0 0.0
    %965 = vmatprep.subr.mxu0 0.0
    %966 = vmatpush1.msra.mxu0 0.0
    %967 = vmatprep.subr.mxu0 0.0
    %968 = vmatpush1.msra.mxu0 0.0
    %969 = vmatprep.subr.mxu0 0.0
    %970 = vmatpush1.msra.mxu0 0.0
    %971 = vmatprep.subr.mxu0 0.0
    %972 = vmatpush1.msra.mxu0 0.0
    %973 = vmatprep.subr.mxu0 0.0
    %974 = vmatpush1.msra.mxu0 0.0
    %975 = vmatprep.subr.mxu0 0.0
    %976 = vmatpush1.msra.mxu0 0.0
    %977 = vmatprep.subr.mxu0 0.0
    %v978 = vand.u32 %v130, 4294901760
    %v979 = vsub.f32 %v130, %v978
    %v980 = vand.u32 %v979, 4294901760
    %981 = vmatpush1.msra.mxu0 %v980
    %982 = vmatprep.subr.mxu0 0.0
    %v983 = vand.u32 %v129, 4294901760
    %v984 = vsub.f32 %v129, %v983
    %v985 = vand.u32 %v984, 4294901760
    %986 = vmatpush1.msra.mxu0 %v985
    %987 = vmatprep.subr.mxu0 0.0
    %v988 = vand.u32 %v128, 4294901760
    %v989 = vsub.f32 %v128, %v988
    %v990 = vand.u32 %v989, 4294901760
    %991 = vmatpush1.msra.mxu0 %v990
    %992 = vmatprep.subr.mxu0 0.0
    %v993 = vand.u32 %v127, 4294901760
    %v994 = vsub.f32 %v127, %v993
    %v995 = vand.u32 %v994, 4294901760
    %996 = vmatpush1.msra.mxu0 %v995
    %997 = vmatprep.subr.mxu0 0.0
    %998 = vmatpush2.msra.mxu0 0.0
    %999 = vmatprep.subr.mxu0 0.0
    %1000 = vmatpush2.msra.mxu0 0.0
    %1001 = vmatprep.subr.mxu0 0.0
    %1002 = vmatpush2.msra.mxu0 0.0
    %1003 = vmatprep.subr.mxu0 0.0
    %1004 = vmatpush2.msra.mxu0 0.0
    %1005 = vmatprep.subr.mxu0 0.0
    %1006 = vmatpush2.msra.mxu0 0.0
    %1007 = vmatprep.subr.mxu0 0.0
    %1008 = vmatpush2.msra.mxu0 0.0
    %1009 = vmatprep.subr.mxu0 0.0
    %1010 = vmatpush2.msra.mxu0 0.0
    %1011 = vmatprep.subr.mxu0 0.0
    %1012 = vmatpush2.msra.mxu0 0.0
    %1013 = vmatprep.subr.mxu0 0.0
    %1014 = vmatpush2.msra.mxu0 0.0
    %1015 = vmatprep.subr.mxu0 0.0
    %1016 = vmatpush2.msra.mxu0 0.0
    %1017 = vmatprep.subr.mxu0 0.0
    %1018 = vmatpush2.msra.mxu0 0.0
    %1019 = vmatprep.subr.mxu0 0.0
    %1020 = vmatpush2.msra.mxu0 0.0
    %1021 = vmatprep.subr.mxu0 0.0
    %1022 = vmatpush2.msra.mxu0 0.0
    %1023 = vmatprep.subr.mxu0 0.0
    %1024 = vmatpush2.msra.mxu0 0.0
    %1025 = vmatprep.subr.mxu0 0.0
    %1026 = vmatpush2.msra.mxu0 0.0
    %1027 = vmatprep.subr.mxu0 0.0
    %1028 = vmatpush2.msra.mxu0 0.0
    %1029 = vmatprep.mubr.f32.mxu0 0.0
    %v1030 = vand.u32 %v135, 4294901760
    %1031 = vmatmul.mubr.f32.gmra.mxu0 %v1030
    %v1032 = vpop.f32.mrf.mxu0
    %v1033 = vadd.f32 %v950, %v1032
    %v1034 = vpop.f32.mrf.mxu0
    %1035 = vdwg.mxu0
    %1036 = vmatprep.subr.mxu0 0.0
    %1037 = vmatpush1.msra.mxu0 0.0
    %1038 = vmatprep.subr.mxu0 0.0
    %1039 = vmatpush1.msra.mxu0 0.0
    %1040 = vmatprep.subr.mxu0 0.0
    %1041 = vmatpush1.msra.mxu0 0.0
    %1042 = vmatprep.subr.mxu0 0.0
    %1043 = vmatpush1.msra.mxu0 0.0
    %1044 = vmatprep.subr.mxu0 0.0
    %1045 = vmatpush1.msra.mxu0 0.0
    %1046 = vmatprep.subr.mxu0 0.0
    %1047 = vmatpush1.msra.mxu0 0.0
    %1048 = vmatprep.subr.mxu0 0.0
    %1049 = vmatpush1.msra.mxu0 0.0
    %1050 = vmatprep.subr.mxu0 0.0
    %1051 = vmatpush1.msra.mxu0 0.0
    %1052 = vmatprep.subr.mxu0 0.0
    %1053 = vmatpush1.msra.mxu0 0.0
    %1054 = vmatprep.subr.mxu0 0.0
    %1055 = vmatpush1.msra.mxu0 0.0
    %1056 = vmatprep.subr.mxu0 0.0
    %1057 = vmatpush1.msra.mxu0 0.0
    %1058 = vmatprep.subr.mxu0 0.0
    %1059 = vmatpush1.msra.mxu0 0.0
    %1060 = vmatprep.subr.mxu0 0.0
    %v1061 = vand.u32 %v130, 4294901760
    %1062 = vmatpush1.msra.mxu0 %v1061
    %1063 = vmatprep.subr.mxu0 0.0
    %v1064 = vand.u32 %v129, 4294901760
    %1065 = vmatpush1.msra.mxu0 %v1064
    %1066 = vmatprep.subr.mxu0 0.0
    %v1067 = vand.u32 %v128, 4294901760
    %1068 = vmatpush1.msra.mxu0 %v1067
    %1069 = vmatprep.subr.mxu0 0.0
    %v1070 = vand.u32 %v127, 4294901760
    %1071 = vmatpush1.msra.mxu0 %v1070
    %1072 = vmatprep.subr.mxu0 0.0
    %1073 = vmatpush2.msra.mxu0 0.0
    %1074 = vmatprep.subr.mxu0 0.0
    %1075 = vmatpush2.msra.mxu0 0.0
    %1076 = vmatprep.subr.mxu0 0.0
    %1077 = vmatpush2.msra.mxu0 0.0
    %1078 = vmatprep.subr.mxu0 0.0
    %1079 = vmatpush2.msra.mxu0 0.0
    %1080 = vmatprep.subr.mxu0 0.0
    %1081 = vmatpush2.msra.mxu0 0.0
    %1082 = vmatprep.subr.mxu0 0.0
    %1083 = vmatpush2.msra.mxu0 0.0
    %1084 = vmatprep.subr.mxu0 0.0
    %1085 = vmatpush2.msra.mxu0 0.0
    %1086 = vmatprep.subr.mxu0 0.0
    %1087 = vmatpush2.msra.mxu0 0.0
    %1088 = vmatprep.subr.mxu0 0.0
    %1089 = vmatpush2.msra.mxu0 0.0
    %1090 = vmatprep.subr.mxu0 0.0
    %1091 = vmatpush2.msra.mxu0 0.0
    %1092 = vmatprep.subr.mxu0 0.0
    %1093 = vmatpush2.msra.mxu0 0.0
    %1094 = vmatprep.subr.mxu0 0.0
    %1095 = vmatpush2.msra.mxu0 0.0
    %1096 = vmatprep.subr.mxu0 0.0
    %1097 = vmatpush2.msra.mxu0 0.0
    %1098 = vmatprep.subr.mxu0 0.0
    %1099 = vmatpush2.msra.mxu0 0.0
    %1100 = vmatprep.subr.mxu0 0.0
    %1101 = vmatpush2.msra.mxu0 0.0
    %1102 = vmatprep.subr.mxu0 0.0
    %1103 = vmatpush2.msra.mxu0 0.0
    %1104 = vmatprep.mubr.f32.mxu0 0.0
    %v1105 = vand.u32 %v135, 4294901760
    %1106 = vmatmul.mubr.f32.gmra.mxu0 %v1105
    %v1107 = vpop.f32.mrf.mxu0
    %v1108 = vadd.f32 %v1033, %v1107
    %v1109 = vpop.f32.mrf.mxu0
    %1110 = vdwg.mxu0
    %v1111 = vadd.f32 %v625, %v1108
    %1112 = vst.msk [vmem:[#allocation11] sm:$0x1] %vm623, %v1111
    // Predicated region
    $region38: #{tpu_custom_call.1} parent=1 // pred_check
      _
    $region39: #{tpu_custom_call.1} parent=1 // pred_check_branch
      %1114 = sbr.rel (0) target = $region41
    $region40: #{tpu_custom_call.1} parent=1 // pred_region
      %s1116 = ssub.s32 16, 16
      %1117 = vsyncadd [#allocation4], %s1116
      %s1119 = sshll.u32 [#allocation10], 4
      %s1120 = int_to_ptr.vmem [resolvable:$true] %s1119
      %1122 = dma.vmem_to_hbm [thread:$0]  %s1120, 16, %s4, [#allocation4]
    $region41: #{tpu_custom_call.1} parent=1 // pred_fallthru
      _
    // Predicated region
    $region42: #{tpu_custom_call.1} parent=1 // pred_check
      _
    $region43: #{tpu_custom_call.1} parent=1 // pred_check_branch
      %1124 = sbr.rel (0) target = $region45
    $region44: #{tpu_custom_call.1} parent=1 // pred_region
      %s1126 = ssub.s32 16, 16
      %1127 = vsyncadd [#allocation12], %s1126
      %s1129 = sshll.u32 [#allocation11], 4
      %s1130 = int_to_ptr.vmem [resolvable:$true] %s1129
      %1132 = dma.vmem_to_hbm [thread:$0]  %s1130, 16, %s5, [#allocation12]
    $region45: #{tpu_custom_call.1} parent=1 // pred_fallthru
      _
    // Predicated region
    $region46: #{tpu_custom_call.1} parent=1 // pred_check
      _
    $region47: #{tpu_custom_call.1} parent=1 // pred_check_branch
      %1134 = sbr.rel (0) target = $region49
    $region48: #{tpu_custom_call.1} parent=1 // pred_region
      %1135 = dma.done [#allocation4], 16
    $region49: #{tpu_custom_call.1} parent=1 // pred_fallthru
      _
    // Predicated region
    $region50: #{tpu_custom_call.1} parent=1 // pred_check
      _
    $region51: #{tpu_custom_call.1} parent=1 // pred_check_branch
      %1137 = sbr.rel (0) target = $region53
    $region52: #{tpu_custom_call.1} parent=1 // pred_region
      %1138 = dma.done [#allocation12], 16
    $region53: #{tpu_custom_call.1} parent=1 // pred_fallthru
      _
    %1139 = vsyncpa [#allocation3], 1
    %1140 = vsyncpa [#allocation6], 1
    %1141 = vsyncpa [#allocation9], 1
    %1142 = vsyncpa [#allocation4], 1
    %1143 = vsyncpa [#allocation12], 1

</llo_original>
